<compile_context>
chip_gen: v7x
topology: tpu7x:2x2x1
jax: 0.10.0
libtpu: 0.0.40
codegen_flags: <defaults>
</compile_context>

<pallas_src>
import math

import jax
import jax.numpy as jnp
from jax.experimental import pallas as pl
from jax.experimental.pallas import tpu as pltpu


def _round_up(n, m):
    return ((n + m - 1) // m) * m


def _pick_tile(total, want):
    """Largest multiple of 128 that is <= want and divides `total`.
    `total` must already be a multiple of 128."""
    t = max(128, (min(want, total) // 128) * 128)
    while total % t != 0:
        t -= 128
    return t


def _chip_profile():
    """Best-effort chip detection with conservative fall-backs."""
    kind = ""
    try:
        kind = jax.devices()[0].device_kind.lower()
    except Exception:
        pass
    is_v7 = "v7" in kind
    return {
        # Only v7x has 2 TensorCores/chip; only then does splitting the
        # output into >= 2 tiles buy parallelism.
        "multi_tc": is_v7,
        # v7x: 64 MiB physical VMEM -> keep working set well under it.
        "vmem_cap_bytes": (48 << 20) if is_v7 else (96 << 20),
        # v7x HBM ~2.3x faster/byte than v6e -> prefer the dense path longer.
        "dense_bytes_limit": (1 << 30) if is_v7 else (512 << 20),
    }


def prepare_dense_weights(connections, weights, n_in, *, n_in_pad=None,
                          n_out_pad=None, dtype=jnp.float32):
    """Densify the sparse (connections, weights) into a padded
    (n_in_pad, n_out_pad) matrix.  Duplicate connection indices accumulate;
    negative / out-of-range indices are dropped (contribute 0).

    Call this ONCE at parameter-setup time (or whenever weights change) and
    pass the result to `positional_sparse_linear3d_forward(dense_weights=...)`
    to keep the O(N_in*N_out) scatter out of the per-call hot path."""
    n_out, _ = connections.shape
    if n_in_pad is None:
        n_in_pad = _round_up(n_in, 128)
    if n_out_pad is None:
        n_out_pad = _round_up(n_out, 128)
    conn = connections.astype(jnp.int32)
    w = weights.astype(jnp.float32)
    valid = (conn >= 0) & (conn < n_in)
    cols = jnp.broadcast_to(
        jnp.arange(n_out, dtype=jnp.int32)[:, None], conn.shape)
    w_dense = jnp.zeros((n_in_pad, n_out_pad), jnp.float32)
    w_dense = w_dense.at[jnp.where(valid, conn, 0), cols].add(
        jnp.where(valid, w, jnp.float32(0.0)))
    return w_dense.astype(dtype)


# ---------------------------------------------------------------------------
# Path 1 (default): dense weight matrix + plain tiled MXU matmul.
# ---------------------------------------------------------------------------
def _dense_matmul_kernel_acc(x_ref, w_ref, o_ref, acc_ref):
    @pl.when(pl.program_id(2) == 0)
    def _():
        acc_ref[...] = jnp.zeros_like(acc_ref)

    acc_ref[...] += jnp.dot(x_ref[...], w_ref[...],
                            preferred_element_type=jnp.float32)

    @pl.when(pl.program_id(2) == pl.num_programs(2) - 1)
    def _():
        o_ref[...] = acc_ref[...].astype(o_ref.dtype)


def _dense_matmul_kernel_single_k(x_ref, w_ref, o_ref):
    # Single reduction step: no accumulator scratch, no pl.when regions.
    o_ref[...] = jnp.dot(x_ref[...], w_ref[...],
                         preferred_element_type=jnp.float32
                         ).astype(o_ref.dtype)


# ---------------------------------------------------------------------------
# Path 2 (fallback for huge N_in * N_out): in-kernel sel build with N_in as a
# masked reduction grid axis, f32 VMEM accumulator and scalar-prefetched
# per-(tile, window) counts to skip empty input windows.
# ---------------------------------------------------------------------------
def _sparse_sel_kernel(counts_ref, x_ref, conn_ref, w_ref, o_ref, acc_ref):
    jj = pl.program_id(0)          # output tile
    kk = pl.program_id(1)          # input-window (reduction) step
    n_kk = pl.num_programs(1)

    @pl.when(kk == 0)
    def _():
        acc_ref[...] = jnp.zeros_like(acc_ref)

    cnt = counts_ref[jj * n_kk + kk]

    @pl.when(cnt > 0)
    def _():
        tn_in = x_ref.shape[1]
        n_k, to = conn_ref.shape
        i0 = kk * tn_in
        # sel[i, o] = sum_k w[k, o] * (conn[k, o] - i0 == i). Connections
        # outside this input window (incl. the -1 padding) never match and
        # contribute 0.  Shift the (1, TO) connection row, not the iota.
        iota = jax.lax.broadcasted_iota(jnp.int32, (tn_in, to), 0)
        sel = jnp.zeros((tn_in, to), x_ref.dtype)
        for k_ in range(n_k):          # K (weight_per_out) is small: unroll
            c = conn_ref[k_:k_ + 1, :] - i0       # (1, TO) int32
            w = w_ref[k_:k_ + 1, :]               # (1, TO)
            sel = sel + jnp.where(iota == c, w, sel.dtype.type(0))
        acc_ref[...] += jnp.dot(x_ref[...], sel,
                                preferred_element_type=jnp.float32)

    @pl.when(kk == n_kk - 1)
    def _():
        o_ref[...] = acc_ref[...].astype(o_ref.dtype)


def positional_sparse_linear3d_forward(
        x, connections, weights, out_depth, out_height, out_width, *,
        dense_weights=None,
        tile_out=512, tile_in=2048,
        tile_out_sparse=512, tile_in_sparse=512,
        use_bf16=False,
        dense_bytes_limit=None, force_sparse=False):
    """x: (B, in_d, in_h, in_w) f32; connections: (N_out, K) int32;
    weights: (N_out, K) f32 -> (B, out_d, out_h, out_w) f32.

    `dense_weights`: optional precomputed output of prepare_dense_weights()
    (hoists the O(N_in*N_out) densification out of the per-call hot path)."""
    chip = _chip_profile()
    if dense_bytes_limit is None:
        dense_bytes_limit = chip["dense_bytes_limit"]

    B = x.shape[0]
    n_in = x.shape[1] * x.shape[2] * x.shape[3]
    n_out, n_k = connections.shape
    assert n_out == out_depth * out_height * out_width

    # ---- pad to TPU-friendly shapes --------------------------------------
    B_pad = max(8, _round_up(B, 8))
    if B_pad > 128:
        B_pad = _round_up(B_pad, 128)
        tm = 128
    else:
        tm = B_pad
    n_in_pad = _round_up(n_in, 128)
    n_out_pad = _round_up(n_out, 128)

    compute_dtype = jnp.bfloat16 if use_bf16 else jnp.float32
    x_item = 2 if use_bf16 else 4

    x_flat = x.reshape(B, n_in).astype(jnp.float32)
    x_pad = jnp.pad(x_flat, ((0, B_pad - B), (0, n_in_pad - n_in)))
    x_pad = x_pad.astype(compute_dtype)

    connections = connections.astype(jnp.int32)
    weights = weights.astype(jnp.float32)

    use_dense = (not force_sparse) and (
        dense_weights is not None
        or n_in_pad * n_out_pad * x_item <= dense_bytes_limit)

    if use_dense:
        # ---- tile selection -------------------------------------------
        tn = _pick_tile(n_out_pad, tile_out)
        tk = _pick_tile(n_in_pad, tile_in)
        # Only on multi-TC chips (v7x) is keeping >= 2 output tiles useful.
        if chip["multi_tc"] and n_out_pad // tn < 2 and n_out_pad > 128:
            tn = _pick_tile(n_out_pad, max(128, n_out_pad // 2))

        # Clamp so the double-buffered working set fits the chip's VMEM.
        def _need(tm_, tk_, tn_):
            return (2 * tm_ * tk_ * x_item + 2 * tk_ * tn_ * x_item
                    + 2 * tm_ * tn_ * 4 + tm_ * tn_ * 4)
        budget = chip["vmem_cap_bytes"] - (8 << 20)
        while _need(tm, tk, tn) > budget and tk > 128:
            tk = _pick_tile(n_in_pad, tk - 128)
        while _need(tm, tk, tn) > budget and tn > 128:
            tn = _pick_tile(n_out_pad, tn - 128)
        vmem_limit = int(min(max(_need(tm, tk, tn) + (4 << 20), 32 << 20),
                             chip["vmem_cap_bytes"]))

        if dense_weights is None:
            # NOTE: prefer precomputing this once via prepare_dense_weights.
            w_dense = prepare_dense_weights(
                connections, weights, n_in, n_in_pad=n_in_pad,
                n_out_pad=n_out_pad, dtype=compute_dtype)
        else:
            w_dense = dense_weights
            assert w_dense.shape == (n_in_pad, n_out_pad), (
                f"dense_weights must be {(n_in_pad, n_out_pad)}, "
                f"got {w_dense.shape}")
            w_dense = w_dense.astype(compute_dtype)

        m_tiles = B_pad // tm
        n_tiles = n_out_pad // tn
        k_tiles = n_in_pad // tk
        cost = pl.CostEstimate(
            flops=2 * B_pad * n_in_pad * n_out_pad,
            transcendentals=0,
            bytes_accessed=(x_pad.size * x_pad.dtype.itemsize * n_tiles
                            + w_dense.size * w_dense.dtype.itemsize * m_tiles
                            + B_pad * n_out_pad * 4))
        cparams = pltpu.CompilerParams(
            dimension_semantics=(("parallel", "parallel", "arbitrary")
                                 if k_tiles > 1
                                 else ("parallel", "parallel")),
            vmem_limit_bytes=vmem_limit)

        if k_tiles == 1:
            out_pad = pl.pallas_call(
                _dense_matmul_kernel_single_k,
                out_shape=jax.ShapeDtypeStruct((B_pad, n_out_pad),
                                               jnp.float32),
                grid_spec=pltpu.PrefetchScalarGridSpec(
                    num_scalar_prefetch=0,
                    grid=(m_tiles, n_tiles),
                    in_specs=[
                        pl.BlockSpec((tm, tk), lambda i, j: (i, 0)),
                        pl.BlockSpec((tk, tn), lambda i, j: (0, j)),
                    ],
                    out_specs=pl.BlockSpec((tm, tn), lambda i, j: (i, j))),
                compiler_params=cparams,
                cost_estimate=cost,
            )(x_pad, w_dense)
        else:
            out_pad = pl.pallas_call(
                _dense_matmul_kernel_acc,
                out_shape=jax.ShapeDtypeStruct((B_pad, n_out_pad),
                                               jnp.float32),
                grid_spec=pltpu.PrefetchScalarGridSpec(
                    num_scalar_prefetch=0,
                    grid=(m_tiles, n_tiles, k_tiles),
                    in_specs=[
                        pl.BlockSpec((tm, tk), lambda i, j, k: (i, k)),
                        pl.BlockSpec((tk, tn), lambda i, j, k: (k, j)),
                    ],
                    out_specs=pl.BlockSpec((tm, tn), lambda i, j, k: (i, j)),
                    scratch_shapes=[pltpu.VMEM((tm, tn), jnp.float32)]),
                compiler_params=cparams,
                cost_estimate=cost,
            )(x_pad, w_dense)
    else:
        # ---- sparse fallback -------------------------------------------
        tn_s = _pick_tile(n_out_pad, tile_out_sparse)
        tk_s = _pick_tile(n_in_pad, tile_in_sparse)
        n_j = n_out_pad // tn_s
        n_kk = n_in_pad // tk_s

        # Per (output tile j, input window kk) connection counts, so the
        # kernel can skip windows that contain no connections (P2).
        valid = (connections >= 0) & (connections < n_in)
        win = jnp.where(valid, connections // tk_s, 0)
        tile_of_out = jnp.broadcast_to(
            (jnp.arange(n_out, dtype=jnp.int32) // tn_s)[:, None],
            connections.shape)
        counts = jnp.zeros((n_j, n_kk), jnp.int32).at[tile_of_out, win].add(
            jnp.where(valid, 1, 0).astype(jnp.int32))
        counts_flat = counts.reshape(-1)

        # Pad connections with -1 (never matches any in-window iota) and
        # weights with 0 along the output axis; transpose so the lane (fast)
        # axis maps to output positions.
        conn_pad = jnp.pad(connections, ((0, n_out_pad - n_out), (0, 0)),
                           constant_values=-1)
        w_pad = jnp.pad(weights, ((0, n_out_pad - n_out), (0, 0)))
        conn_t = conn_pad.T                             # (K, n_out_pad)
        w_t = w_pad.T.astype(compute_dtype)             # (K, n_out_pad)

        vmem_need = (2 * B_pad * tk_s * x_item + 2 * B_pad * tn_s * 4
                     + 4 * n_k * tn_s * 4 + B_pad * tn_s * 4
                     + 3 * tk_s * tn_s * 4)
        vmem_limit = int(min(max(vmem_need + (8 << 20), 32 << 20),
                             chip["vmem_cap_bytes"]))

        cost = pl.CostEstimate(
            flops=(2 * B_pad * n_in_pad * n_out_pad
                   + 3 * n_k * n_in_pad * n_out_pad),   # sel-build VPU work
            transcendentals=0,
            bytes_accessed=(x_pad.size * x_pad.dtype.itemsize * n_j
                            + conn_t.size * 4 + w_t.size * 4
                            + B_pad * n_out_pad * 4))

        # TODO(synk): for very large batches add a batch grid axis and cache
        # sel in a VMEM scratch (rebuild only on the first batch tile).
        out_pad = pl.pallas_call(
            _sparse_sel_kernel,
            out_shape=jax.ShapeDtypeStruct((B_pad, n_out_pad), jnp.float32),
            grid_spec=pltpu.PrefetchScalarGridSpec(
                num_scalar_prefetch=1,
                grid=(n_j, n_kk),
                in_specs=[
                    pl.BlockSpec((B_pad, tk_s), lambda j, k, cnt: (0, k)),
                    pl.BlockSpec((n_k, tn_s), lambda j, k, cnt: (0, j)),
                    pl.BlockSpec((n_k, tn_s), lambda j, k, cnt: (0, j)),
                ],
                out_specs=pl.BlockSpec((B_pad, tn_s),
                                       lambda j, k, cnt: (0, j)),
                scratch_shapes=[pltpu.VMEM((B_pad, tn_s), jnp.float32)]),
            compiler_params=pltpu.CompilerParams(
                dimension_semantics=("parallel", "arbitrary"),
                vmem_limit_bytes=vmem_limit),
            cost_estimate=cost,
        )(counts_flat, x_pad, conn_t, w_t)

    out = out_pad[:B, :n_out]
    return out.reshape(B, out_depth, out_height, out_width)


def _reference_forward(x, connections, weights,
                       out_depth, out_height, out_width):
    B = x.shape[0]
    x_flat = x.reshape(B, -1)
    gathered = x_flat[:, connections]            # (B, N_out, K)
    out = jnp.einsum("bok,ok->bo", gathered, weights)
    return out.reshape(B, out_depth, out_height, out_width)


if __name__ == "__main__":
    # Module configuration (small, TPU-friendly shapes)
    in_depth, in_height, in_width = 4, 8, 8       # N_in  = 256
    out_depth, out_height, out_width = 4, 8, 8    # N_out = 256
    weight_per_out = 5
    batch = 2

    n_in = in_depth * in_height * in_width
    n_out = out_depth * out_height * out_width

    key = jax.random.PRNGKey(0)
    k_x, k_conn, k_w = jax.random.split(key, 3)

    # Deterministic synthetic parameters (mirrors the no_position_influence
    # init: random integer connections + uniform(-1/sqrt(K), 1/sqrt(K))
    # weights).
    # TODO(synk): positional multinomial sampling of connections is init-time
    # only and not part of the forward hot path; random connections used here.
    connections = jax.random.randint(
        k_conn, (n_out, weight_per_out), 0, n_in, dtype=jnp.int32)
    bound = 1.0 / math.sqrt(weight_per_out)
    weights = jax.random.uniform(
        k_w, (n_out, weight_per_out), jnp.float32, minval=-bound, maxval=bound)

    x = jax.random.normal(k_x, (batch, in_depth, in_height, in_width),
                          jnp.float32)

    # Hoisted densification (param-setup time, not per-call).
    w_dense = prepare_dense_weights(connections, weights, n_in)
    w_dense = jax.block_until_ready(w_dense)

    # Default dense-matmul path with precomputed dense weights.
    out = positional_sparse_linear3d_forward(
        x, connections, weights, out_depth, out_height, out_width,
        dense_weights=w_dense)
    out = jax.block_until_ready(out)

    # Dense path with in-call densification (same result).
    out_d2 = positional_sparse_linear3d_forward(
        x, connections, weights, out_depth, out_height, out_width)
    out_d2 = jax.block_until_ready(out_d2)

    # Sparse fallback path (scalar-prefetched window skipping).
    out_sparse = positional_sparse_linear3d_forward(
        x, connections, weights, out_depth, out_height, out_width,
        force_sparse=True)
    out_sparse = jax.block_until_ready(out_sparse)

    ref = _reference_forward(x, connections, weights,
                             out_depth, out_height, out_width)

    assert out.shape == (batch, out_depth, out_height, out_width)
    assert jnp.allclose(out, ref, rtol=1e-5, atol=1e-5), \
        "dense path (precomputed W) mismatch"
    assert jnp.allclose(out_d2, ref, rtol=1e-5, atol=1e-5), \
        "dense path (in-call densify) mismatch"
    assert jnp.allclose(out_sparse, ref, rtol=1e-5, atol=1e-5), \
        "sparse fallback mismatch"

    print("KERNEL_OK")
</pallas_src>

<mosaic_0001>
module attributes {stable_mosaic.version = 11 : i64} {
  func.func @_dense_matmul_kernel_single_k(%arg0: i32, %arg1: i32, %arg2: memref<8x256xf32, #tpu.memory_space<vmem>>, %arg3: memref<256x256xf32, #tpu.memory_space<vmem>>, %arg4: memref<8x256xf32, #tpu.memory_space<vmem>>) attributes {dimension_semantics = [#tpu.dimension_semantics<parallel>, #tpu.dimension_semantics<parallel>], iteration_bounds = array<i64: 1, 1>, scalar_prefetch = 0 : i64, scratch_operands = 0 : i64, tpu.core_type = #tpu.core_type<tc>, window_params = [{transform_indices = @transform_0, window_bounds = array<i64: 8, 256>}, {transform_indices = @transform_1, window_bounds = array<i64: 256, 256>}, {transform_indices = @transform_2, window_bounds = array<i64: 8, 256>}]} {
    %c0 = arith.constant 0 : index
    %c0_0 = arith.constant 0 : index
    %0 = vector.load %arg2[%c0, %c0_0] : memref<8x256xf32, #tpu.memory_space<vmem>>, vector<8x256xf32>
    %c0_1 = arith.constant 0 : index
    %c0_2 = arith.constant 0 : index
    %1 = vector.load %arg3[%c0_1, %c0_2] : memref<256x256xf32, #tpu.memory_space<vmem>>, vector<256x256xf32>
    %cst = arith.constant dense<0.000000e+00> : vector<8x256xf32>
    %2 = tpu.matmul %0, %1, %cst {dimension_numbers = #tpu.dot_dimension_numbers<[1], [0], [0], [1], [0, 0, 1, 1], [], []>} : vector<8x256xf32>, vector<256x256xf32>, vector<8x256xf32> -> vector<8x256xf32>
    %c0_3 = arith.constant 0 : index
    %c0_4 = arith.constant 0 : index
    %3 = vector.load %arg4[%c0_3, %c0_4] : memref<8x256xf32, #tpu.memory_space<vmem>>, vector<8x256xf32>
    tpu.vector_store %arg4[%c0_3, %c0_4], %2 {strides = array<i32>} : memref<8x256xf32, #tpu.memory_space<vmem>>, vector<8x256xf32>,
    return
  }
  func.func @transform_0(%arg0: i32, %arg1: i32) -> (i32, i32) {
    %c0_i32 = arith.constant 0 : i32
    %c0_i32_0 = arith.constant 0 : i32
    return %arg0, %c0_i32 : i32, i32
  }
  func.func @transform_1(%arg0: i32, %arg1: i32) -> (i32, i32) {
    %c0_i32 = arith.constant 0 : i32
    %c0_i32_0 = arith.constant 0 : i32
    return %c0_i32, %arg1 : i32, i32
  }
  func.func @transform_2(%arg0: i32, %arg1: i32) -> (i32, i32) {
    %c0_i32 = arith.constant 0 : i32
    return %arg0, %arg1 : i32, i32
  }
}

</mosaic_0001>

<llo_original>
// kernel: tpu_custom_call.1
$region0: #{tpu_custom_call.1}
  #allocation0 [shape = 'u32[]', space=smem, size = 0x4, offset = 0x4, fixed_abs, tag = 'smem constant byte address 0x4 - core index']
  #allocation1 [shape = 'u32[144,128]{1,0:T(1,128)}', space=vmem, size = 0x12000, scoped, tag = 'internal scratch']
  %s0 = inlined_call_operand.hbm [shape: f32[8,256], index: 0, kind: input, shape index: {}]
  %s1 = inlined_call_operand.hbm [shape: f32[256,256], index: 1, kind: input, shape index: {}]
  %s2 = inlined_call_operand.hbm [shape: f32[8,256], index: 2, kind: output, shape index: {}]
  %s3 = sld [smem:[#allocation0]]
  $region26: #{tpu_custom_call.1} parent=0
    _
  %s5 = ssub.s32 1, %s3
  %s6 = scalar_select 0, %s5, %s3
  $region1: #{tpu_custom_call.1} parent=0
    #allocation2 [shape = 'u8[8192]{0}', space=vmem, size = 0x2000, scoped, tag = 'input window, operand 0, single buffered']
    #allocation3 [shape = 's32[1]{0}', space=sflag, size = 0x4, scoped, tag = 'scoped memory for tpu_custom_call.1']
    #allocation4 [shape = 's32[1]{0}', space=sflag, size = 0x4, scoped, tag = 'scoped memory for tpu_custom_call.1']
    #allocation5 [shape = 'u8[262144]{0}', space=vmem, size = 0x40000, scoped, tag = 'input window, operand 1, single buffered']
    #allocation6 [shape = 's32[1]{0}', space=sflag, size = 0x4, scoped, tag = 'scoped memory for tpu_custom_call.1']
    #allocation7 [shape = 'u8[8192]{0}', space=vmem, size = 0x2000, scoped, tag = 'output window, operand 0, single buffered']
    %7 = vsyncpa [#allocation3], 0
    %8 = vsyncpa [#allocation6], 0
    %9 = vsyncpa [#allocation4], 0
    // Predicated region
    $region2: #{tpu_custom_call.1} parent=1 // pred_check
      _
    $region3: #{tpu_custom_call.1} parent=1 // pred_check_branch
      %11 = sbr.rel (0) target = $region5
    $region4: #{tpu_custom_call.1} parent=1 // pred_region
      %s13 = ssub.s32 256, 256
      %14 = vsyncadd [#allocation3], %s13
      %s16 = sshll.u32 [#allocation2], 4
      %s17 = int_to_ptr.vmem [resolvable:$true] %s16
      %19 = dma.hbm_to_vmem [thread:$0]  %s0, 256, %s17, [#allocation3]
    $region5: #{tpu_custom_call.1} parent=1 // pred_fallthru
      _
    // Predicated region
    $region6: #{tpu_custom_call.1} parent=1 // pred_check
      _
    $region7: #{tpu_custom_call.1} parent=1 // pred_check_branch
      %21 = sbr.rel (0) target = $region9
    $region8: #{tpu_custom_call.1} parent=1 // pred_region
      %s23 = ssub.s32 8192, 8192
      %24 = vsyncadd [#allocation6], %s23
      %s25 = sshll.u32 [#allocation5], 4
      %s26 = int_to_ptr.vmem [resolvable:$true] %s25
      %31 = dma.hbm_to_vmem [thread:$0]  %s1, 8192, %s26, [#allocation6], 256, 256, 16
    $region9: #{tpu_custom_call.1} parent=1 // pred_fallthru
      _
    // Predicated region
    $region10: #{tpu_custom_call.1} parent=1 // pred_check
      _
    $region11: #{tpu_custom_call.1} parent=1 // pred_check_branch
      %33 = sbr.rel (0) target = $region13
    $region12: #{tpu_custom_call.1} parent=1 // pred_region
      %34 = dma.done [#allocation3], 256
    $region13: #{tpu_custom_call.1} parent=1 // pred_fallthru
      _
    // Predicated region
    $region14: #{tpu_custom_call.1} parent=1 // pred_check
      _
    $region15: #{tpu_custom_call.1} parent=1 // pred_check_branch
      %36 = sbr.rel (0) target = $region17
    $region16: #{tpu_custom_call.1} parent=1 // pred_region
      %37 = dma.done [#allocation6], 8192
    $region17: #{tpu_custom_call.1} parent=1 // pred_fallthru
      _
    %v38 = vld [vmem:[#allocation2] sm:$0xff]
    %v39 = vld [vmem:[#allocation2 + $0x8] sm:$0xff]
    %v40 = vld [vmem:[#allocation5] sm:$0xff]
    %v41 = vld [vmem:[#allocation5 + $0x8] sm:$0xff]
    %v42 = vld [vmem:[#allocation5 + $0x10] sm:$0xff]
    %v43 = vld [vmem:[#allocation5 + $0x18] sm:$0xff]
    %v44 = vld [vmem:[#allocation5 + $0x20] sm:$0xff]
    %v45 = vld [vmem:[#allocation5 + $0x28] sm:$0xff]
    %v46 = vld [vmem:[#allocation5 + $0x30] sm:$0xff]
    %v47 = vld [vmem:[#allocation5 + $0x38] sm:$0xff]
    %v48 = vld [vmem:[#allocation5 + $0x40] sm:$0xff]
    %v49 = vld [vmem:[#allocation5 + $0x48] sm:$0xff]
    %v50 = vld [vmem:[#allocation5 + $0x50] sm:$0xff]
    %v51 = vld [vmem:[#allocation5 + $0x58] sm:$0xff]
    %v52 = vld [vmem:[#allocation5 + $0x60] sm:$0xff]
    %v53 = vld [vmem:[#allocation5 + $0x68] sm:$0xff]
    %v54 = vld [vmem:[#allocation5 + $0x70] sm:$0xff]
    %v55 = vld [vmem:[#allocation5 + $0x78] sm:$0xff]
    %v56 = vld [vmem:[#allocation5 + $0x80] sm:$0xff]
    %v57 = vld [vmem:[#allocation5 + $0x88] sm:$0xff]
    %v58 = vld [vmem:[#allocation5 + $0x90] sm:$0xff]
    %v59 = vld [vmem:[#allocation5 + $0x98] sm:$0xff]
    %v60 = vld [vmem:[#allocation5 + $0xa0] sm:$0xff]
    %v61 = vld [vmem:[#allocation5 + $0xa8] sm:$0xff]
    %v62 = vld [vmem:[#allocation5 + $0xb0] sm:$0xff]
    %v63 = vld [vmem:[#allocation5 + $0xb8] sm:$0xff]
    %v64 = vld [vmem:[#allocation5 + $0xc0] sm:$0xff]
    %v65 = vld [vmem:[#allocation5 + $0xc8] sm:$0xff]
    %v66 = vld [vmem:[#allocation5 + $0xd0] sm:$0xff]
    %v67 = vld [vmem:[#allocation5 + $0xd8] sm:$0xff]
    %v68 = vld [vmem:[#allocation5 + $0xe0] sm:$0xff]
    %v69 = vld [vmem:[#allocation5 + $0xe8] sm:$0xff]
    %v70 = vld [vmem:[#allocation5 + $0xf0] sm:$0xff]
    %v71 = vld [vmem:[#allocation5 + $0xf8] sm:$0xff]
    %v72 = vld [vmem:[#allocation5 + $0x100] sm:$0xff]
    %v73 = vld [vmem:[#allocation5 + $0x108] sm:$0xff]
    %v74 = vld [vmem:[#allocation5 + $0x110] sm:$0xff]
    %v75 = vld [vmem:[#allocation5 + $0x118] sm:$0xff]
    %v76 = vld [vmem:[#allocation5 + $0x120] sm:$0xff]
    %v77 = vld [vmem:[#allocation5 + $0x128] sm:$0xff]
    %v78 = vld [vmem:[#allocation5 + $0x130] sm:$0xff]
    %v79 = vld [vmem:[#allocation5 + $0x138] sm:$0xff]
    %v80 = vld [vmem:[#allocation5 + $0x140] sm:$0xff]
    %v81 = vld [vmem:[#allocation5 + $0x148] sm:$0xff]
    %v82 = vld [vmem:[#allocation5 + $0x150] sm:$0xff]
    %v83 = vld [vmem:[#allocation5 + $0x158] sm:$0xff]
    %v84 = vld [vmem:[#allocation5 + $0x160] sm:$0xff]
    %v85 = vld [vmem:[#allocation5 + $0x168] sm:$0xff]
    %v86 = vld [vmem:[#allocation5 + $0x170] sm:$0xff]
    %v87 = vld [vmem:[#allocation5 + $0x178] sm:$0xff]
    %v88 = vld [vmem:[#allocation5 + $0x180] sm:$0xff]
    %v89 = vld [vmem:[#allocation5 + $0x188] sm:$0xff]
    %v90 = vld [vmem:[#allocation5 + $0x190] sm:$0xff]
    %v91 = vld [vmem:[#allocation5 + $0x198] sm:$0xff]
    %v92 = vld [vmem:[#allocation5 + $0x1a0] sm:$0xff]
    %v93 = vld [vmem:[#allocation5 + $0x1a8] sm:$0xff]
    %v94 = vld [vmem:[#allocation5 + $0x1b0] sm:$0xff]
    %v95 = vld [vmem:[#allocation5 + $0x1b8] sm:$0xff]
    %v96 = vld [vmem:[#allocation5 + $0x1c0] sm:$0xff]
    %v97 = vld [vmem:[#allocation5 + $0x1c8] sm:$0xff]
    %v98 = vld [vmem:[#allocation5 + $0x1d0] sm:$0xff]
    %v99 = vld [vmem:[#allocation5 + $0x1d8] sm:$0xff]
    %v100 = vld [vmem:[#allocation5 + $0x1e0] sm:$0xff]
    %v101 = vld [vmem:[#allocation5 + $0x1e8] sm:$0xff]
    %v102 = vld [vmem:[#allocation5 + $0x1f0] sm:$0xff]
    %v103 = vld [vmem:[#allocation5 + $0x1f8] sm:$0xff]
    %104 = vmatprep.subr.mxu0 %v41
    %105 = vmatpush1.msra.mxu0 %v40
    %106 = vmatprep.subr.mxu0 %v43
    %107 = vmatpush1.msra.mxu0 %v42
    %108 = vmatprep.subr.mxu0 %v45
    %109 = vmatpush1.msra.mxu0 %v44
    %110 = vmatprep.subr.mxu0 %v47
    %111 = vmatpush1.msra.mxu0 %v46
    %112 = vmatprep.subr.mxu0 %v49
    %113 = vmatpush1.msra.mxu0 %v48
    %114 = vmatprep.subr.mxu0 %v51
    %115 = vmatpush1.msra.mxu0 %v50
    %116 = vmatprep.subr.mxu0 %v53
    %117 = vmatpush1.msra.mxu0 %v52
    %118 = vmatprep.subr.mxu0 %v55
    %119 = vmatpush1.msra.mxu0 %v54
    %120 = vmatprep.subr.mxu0 %v57
    %121 = vmatpush1.msra.mxu0 %v56
    %122 = vmatprep.subr.mxu0 %v59
    %123 = vmatpush1.msra.mxu0 %v58
    %124 = vmatprep.subr.mxu0 %v61
    %125 = vmatpush1.msra.mxu0 %v60
    %126 = vmatprep.subr.mxu0 %v63
    %127 = vmatpush1.msra.mxu0 %v62
    %128 = vmatprep.subr.mxu0 %v65
    %129 = vmatpush1.msra.mxu0 %v64
    %130 = vmatprep.subr.mxu0 %v67
    %131 = vmatpush1.msra.mxu0 %v66
    %132 = vmatprep.subr.mxu0 %v69
    %133 = vmatpush1.msra.mxu0 %v68
    %134 = vmatprep.subr.mxu0 %v71
    %135 = vmatpush1.msra.mxu0 %v70
    %136 = vmatprep.subr.mxu0 %v73
    %137 = vmatpush1.msra.mxu0 %v72
    %138 = vmatprep.subr.mxu0 %v75
    %139 = vmatpush1.msra.mxu0 %v74
    %140 = vmatprep.subr.mxu0 %v77
    %141 = vmatpush1.msra.mxu0 %v76
    %142 = vmatprep.subr.mxu0 %v79
    %143 = vmatpush1.msra.mxu0 %v78
    %144 = vmatprep.subr.mxu0 %v81
    %145 = vmatpush1.msra.mxu0 %v80
    %146 = vmatprep.subr.mxu0 %v83
    %147 = vmatpush1.msra.mxu0 %v82
    %148 = vmatprep.subr.mxu0 %v85
    %149 = vmatpush1.msra.mxu0 %v84
    %150 = vmatprep.subr.mxu0 %v87
    %151 = vmatpush1.msra.mxu0 %v86
    %152 = vmatprep.subr.mxu0 %v89
    %153 = vmatpush1.msra.mxu0 %v88
    %154 = vmatprep.subr.mxu0 %v91
    %155 = vmatpush1.msra.mxu0 %v90
    %156 = vmatprep.subr.mxu0 %v93
    %157 = vmatpush1.msra.mxu0 %v92
    %158 = vmatprep.subr.mxu0 %v95
    %159 = vmatpush1.msra.mxu0 %v94
    %160 = vmatprep.subr.mxu0 %v97
    %161 = vmatpush1.msra.mxu0 %v96
    %162 = vmatprep.subr.mxu0 %v99
    %163 = vmatpush1.msra.mxu0 %v98
    %164 = vmatprep.subr.mxu0 %v101
    %165 = vmatpush1.msra.mxu0 %v100
    %166 = vmatprep.subr.mxu0 %v103
    %167 = vmatpush1.msra.mxu0 %v102
    %168 = vmatprep.mubr.f32.mxu0 %v39
    %169 = vmatmul.mubr.f32.gmra.mrb[0].mxu0 %v38
    %v170 = vpop.f32.mrb[0].mxu0
    %v171 = vadd.f32 0.0, %v170
    %v172 = vpop.f32.mrb[0].mxu0
    %v173 = vadd.f32 0.0, %v172
    %174 = vdwg.mxu0
    %175 = vst [vmem:[#allocation7] sm:$0xff] %v171
    %176 = vst [vmem:[#allocation7 + $0x8] sm:$0xff] %v173
    // Predicated region
    $region18: #{tpu_custom_call.1} parent=1 // pred_check
      _
    $region19: #{tpu_custom_call.1} parent=1 // pred_check_branch
      %178 = sbr.rel (0) target = $region21
    $region20: #{tpu_custom_call.1} parent=1 // pred_region
      %s180 = ssub.s32 256, 256
      %181 = vsyncadd [#allocation4], %s180
      %s183 = sshll.u32 [#allocation7], 4
      %s184 = int_to_ptr.vmem [resolvable:$true] %s183
      %186 = dma.vmem_to_hbm [thread:$0]  %s184, 256, %s2, [#allocation4]
    $region21: #{tpu_custom_call.1} parent=1 // pred_fallthru
      _
    // Predicated region
    $region22: #{tpu_custom_call.1} parent=1 // pred_check
      _
    $region23: #{tpu_custom_call.1} parent=1 // pred_check_branch
      %188 = sbr.rel (0) target = $region25
    $region24: #{tpu_custom_call.1} parent=1 // pred_region
      %189 = dma.done [#allocation4], 256
    $region25: #{tpu_custom_call.1} parent=1 // pred_fallthru
      _
    %190 = vsyncpa [#allocation3], 1
    %191 = vsyncpa [#allocation6], 1
    %192 = vsyncpa [#allocation4], 1

</llo_original>
